<compile_context>
chip_gen: v7x
topology: tpu7x:2x2x1
jax: 0.10.0
libtpu: 0.0.40
codegen_flags: <defaults>
</compile_context>

<pallas_src>
import numpy as np
import jax
import jax.numpy as jnp
from jax.experimental import pallas as pl
from jax.experimental.pallas import tpu as pltpu


def make_hierarchy_kernel(num_hier_levels, n_events, context_dim, total_levels):
    """Kernel closure. Inputs: ev(1,2,D), tm(1,2,L,2), K x hev(1,2,D), K x ht(1,2^(i+2),L,2).
    Outputs: events (1,n_events,D), times (1,n_events,L,2)."""
    K = num_hier_levels

    def kernel(ev_ref, tm_ref, *refs):
        hev_refs = refs[:K]
        ht_refs = refs[K:2 * K]
        out_ev_ref = refs[2 * K]
        out_tm_ref = refs[2 * K + 1]

        if K == 0:
            # n_events == 2: no hierarchical refinement, outputs are the base parameters.
            out_ev_ref[...] = ev_ref[...]
            out_tm_ref[...] = tm_ref[...]
            return

        # Per-prefix partial sums, unrolled at trace time (mirrors the PyTorch doubling loop,
        # so index ordering matches by construction and each partial sum is computed once).
        ev_acc = [ev_ref[0, j:j + 1, :] for j in range(2)]         # each (1, D)
        tm_acc = [tm_ref[0, j:j + 1, :, :] for j in range(2)]      # each (1, L, 2)

        for i in range(K):
            scale = jnp.float32(1.0 / (i + 1))
            scaled = (i + 1) != 1                                   # skip the multiply when scale == 1

            if i < K - 1:
                # Intermediate level: double the prefix lists.
                hev_rows = []
                for b in range(2):
                    r = hev_refs[i][0, b:b + 1, :]                  # (1, D)
                    hev_rows.append(r * scale if scaled else r)
                new_ev, new_tm = [], []
                for p in range(len(ev_acc)):
                    for b in range(2):
                        t = ht_refs[i][0, 2 * p + b:2 * p + b + 1, :, :]   # (1, L, 2)
                        if scaled:
                            t = t * scale
                        new_ev.append(ev_acc[p] + hev_rows[b])
                        new_tm.append(tm_acc[p] + t)
                ev_acc, tm_acc = new_ev, new_tm
            else:
                # Finest level: write each prefix's pair of children straight to the outputs.
                hev_pair = hev_refs[i][0]                           # (2, D)
                if scaled:
                    hev_pair = hev_pair * scale
                for p in range(len(ev_acc)):
                    t = ht_refs[i][0, 2 * p:2 * p + 2, :, :]        # (2, L, 2)
                    if scaled:
                        t = t * scale
                    out_ev_ref[0, 2 * p:2 * p + 2, :] = ev_acc[p] + hev_pair
                    out_tm_ref[0, 2 * p:2 * p + 2, :, :] = tm_acc[p] + t

    return kernel


def overfit_hierarchical_events_forward(params, n_events, context_dim, total_levels):
    """Pallas implementation of OverfitHierarchicalEvents.forward's defined portion.

    Returns (event_vectors, times): (1, n_events, context_dim), (1, n_events, total_levels, 2).
    """
    event_levels = int(round(np.log2(n_events)))
    assert n_events >= 2 and 2 ** event_levels == n_events, \
        "n_events must be a power of two >= 2"
    K = event_levels - 1
    L = total_levels

    kernel = make_hierarchy_kernel(K, n_events, context_dim, L)

    n_inputs = 2 + 2 * K
    ht_rows = sum(2 ** (i + 2) for i in range(K))
    bytes_in = 4 * (2 * context_dim + 2 * 2 * L + K * 2 * context_dim + ht_rows * 2 * L)
    bytes_out = 4 * n_events * (context_dim + 2 * L)
    flops = 2 * n_events * (context_dim + 2 * L) * max(K, 1)

    out_ev, out_tm = pl.pallas_call(
        kernel,
        out_shape=(
            jax.ShapeDtypeStruct((1, n_events, context_dim), jnp.float32),
            jax.ShapeDtypeStruct((1, n_events, L, 2), jnp.float32),
        ),
        in_specs=[pl.BlockSpec(memory_space=pltpu.MemorySpace.VMEM) for _ in range(n_inputs)],
        out_specs=(
            pl.BlockSpec(memory_space=pltpu.MemorySpace.VMEM),
            pl.BlockSpec(memory_space=pltpu.MemorySpace.VMEM),
        ),
        cost_estimate=pl.CostEstimate(
            flops=flops, transcendentals=0, bytes_accessed=bytes_in + bytes_out),
    )(params["event_vectors"], params["times"],
      *params["hier_events"], *params["hier_times"])

    # TODO(synk): MultiHeadTransform / SplattingEventGenerator / make_initializer are external
    # modules whose definitions were not provided, so the rendered-audio branch
    # (`params = transform(events); events = event_generator(**params, times=times)`)
    # cannot be reproduced faithfully; this returns (event_vectors, times).
    return out_ev, out_tm


def reference_forward(params, n_events, context_dim, total_levels):
    """Plain-JAX transcription of the PyTorch doubling loop, for verification."""
    event_levels = int(round(np.log2(n_events)))
    events = params["event_vectors"]          # (1, 2, D)
    times = params["times"]                   # (1, 2, L, 2)
    for i in range(event_levels - 1):
        scale = 1.0 / (i + 1)
        events = (events.reshape(1, -1, 1, context_dim)
                  + params["hier_events"][i].reshape(1, 1, 2, context_dim) * scale)
        events = events.reshape(1, -1, context_dim)
        b, ne, nb, _ = times.shape
        times = jnp.broadcast_to(times.reshape(b, ne, 1, nb, 2), (b, ne, 2, nb, 2))
        times = times.reshape(b, ne * 2, nb, 2)
        times = times + params["hier_times"][i] * scale
    return events, times


if __name__ == "__main__":
    # Small shapes consistent with the module's constructor.
    n_samples = 2048
    n_events = 8
    context_dim = 32
    total_levels = int(np.log2(n_samples))     # 11
    event_levels = int(np.log2(n_events))      # 3
    rng = 0.1

    key = jax.random.PRNGKey(0)
    keys = jax.random.split(key, 2 + 2 * (event_levels - 1))
    params = {
        "event_vectors": jax.random.uniform(
            keys[0], (1, 2, context_dim), jnp.float32, -rng, rng),
        "times": jax.random.uniform(
            keys[1], (1, 2, total_levels, 2), jnp.float32, -rng, rng),
        "hier_events": [
            jax.random.uniform(keys[2 + i], (1, 2, context_dim), jnp.float32, -rng, rng)
            for i in range(event_levels - 1)
        ],
        "hier_times": [
            jax.random.uniform(keys[2 + (event_levels - 1) + i],
                               (1, 2 ** (i + 2), total_levels, 2), jnp.float32, -rng, rng)
            for i in range(event_levels - 1)
        ],
    }

    event_vectors, times = overfit_hierarchical_events_forward(
        params, n_events, context_dim, total_levels)
    jax.block_until_ready((event_vectors, times))

    ref_events, ref_times = reference_forward(params, n_events, context_dim, total_levels)
    assert event_vectors.shape == (1, n_events, context_dim)
    assert times.shape == (1, n_events, total_levels, 2)
    assert np.allclose(np.asarray(event_vectors), np.asarray(ref_events), atol=1e-5)
    assert np.allclose(np.asarray(times), np.asarray(ref_times), atol=1e-5)

    print("KERNEL_OK")
</pallas_src>

<mosaic_0001>
module attributes {stable_mosaic.version = 11 : i64} {
  func.func @kernel(%arg0: memref<1x2x32xf32, #tpu.memory_space<vmem>>, %arg1: memref<1x2x11x2xf32, #tpu.memory_space<vmem>>, %arg2: memref<1x2x32xf32, #tpu.memory_space<vmem>>, %arg3: memref<1x2x32xf32, #tpu.memory_space<vmem>>, %arg4: memref<1x4x11x2xf32, #tpu.memory_space<vmem>>, %arg5: memref<1x8x11x2xf32, #tpu.memory_space<vmem>>, %arg6: memref<1x8x32xf32, #tpu.memory_space<vmem>>, %arg7: memref<1x8x11x2xf32, #tpu.memory_space<vmem>>) attributes {dimension_semantics = [], scalar_prefetch = 0 : i64, scratch_operands = 0 : i64, tpu.core_type = #tpu.core_type<tc>} {
    %c0 = arith.constant 0 : index
    %c0_0 = arith.constant 0 : index
    %c0_1 = arith.constant 0 : index
    %0 = vector.load %arg0[%c0, %c0_0, %c0_1] : memref<1x2x32xf32, #tpu.memory_space<vmem>>, vector<1x1x32xf32>
    %1 = vector.shape_cast %0 : vector<1x1x32xf32> to vector<1x32xf32>
    %c0_2 = arith.constant 0 : index
    %c1 = arith.constant 1 : index
    %c0_3 = arith.constant 0 : index
    %2 = vector.load %arg0[%c0_2, %c1, %c0_3] : memref<1x2x32xf32, #tpu.memory_space<vmem>>, vector<1x1x32xf32>
    %3 = vector.shape_cast %2 : vector<1x1x32xf32> to vector<1x32xf32>
    %c0_4 = arith.constant 0 : index
    %c0_5 = arith.constant 0 : index
    %c0_6 = arith.constant 0 : index
    %c0_7 = arith.constant 0 : index
    %4 = vector.load %arg1[%c0_4, %c0_5, %c0_6, %c0_7] : memref<1x2x11x2xf32, #tpu.memory_space<vmem>>, vector<1x1x11x2xf32>
    %5 = vector.shape_cast %4 : vector<1x1x11x2xf32> to vector<1x11x2xf32>
    %c0_8 = arith.constant 0 : index
    %c1_9 = arith.constant 1 : index
    %c0_10 = arith.constant 0 : index
    %c0_11 = arith.constant 0 : index
    %6 = vector.load %arg1[%c0_8, %c1_9, %c0_10, %c0_11] : memref<1x2x11x2xf32, #tpu.memory_space<vmem>>, vector<1x1x11x2xf32>
    %7 = vector.shape_cast %6 : vector<1x1x11x2xf32> to vector<1x11x2xf32>
    %c0_12 = arith.constant 0 : index
    %c0_13 = arith.constant 0 : index
    %c0_14 = arith.constant 0 : index
    %8 = vector.load %arg2[%c0_12, %c0_13, %c0_14] : memref<1x2x32xf32, #tpu.memory_space<vmem>>, vector<1x1x32xf32>
    %9 = vector.shape_cast %8 : vector<1x1x32xf32> to vector<1x32xf32>
    %c0_15 = arith.constant 0 : index
    %c1_16 = arith.constant 1 : index
    %c0_17 = arith.constant 0 : index
    %10 = vector.load %arg2[%c0_15, %c1_16, %c0_17] : memref<1x2x32xf32, #tpu.memory_space<vmem>>, vector<1x1x32xf32>
    %11 = vector.shape_cast %10 : vector<1x1x32xf32> to vector<1x32xf32>
    %c0_18 = arith.constant 0 : index
    %c0_19 = arith.constant 0 : index
    %c0_20 = arith.constant 0 : index
    %c0_21 = arith.constant 0 : index
    %12 = vector.load %arg4[%c0_18, %c0_19, %c0_20, %c0_21] : memref<1x4x11x2xf32, #tpu.memory_space<vmem>>, vector<1x1x11x2xf32>
    %13 = vector.shape_cast %12 : vector<1x1x11x2xf32> to vector<1x11x2xf32>
    %14 = arith.addf %1, %9 : vector<1x32xf32>
    %15 = arith.addf %5, %13 : vector<1x11x2xf32>
    %c0_22 = arith.constant 0 : index
    %c1_23 = arith.constant 1 : index
    %c0_24 = arith.constant 0 : index
    %c0_25 = arith.constant 0 : index
    %16 = vector.load %arg4[%c0_22, %c1_23, %c0_24, %c0_25] : memref<1x4x11x2xf32, #tpu.memory_space<vmem>>, vector<1x1x11x2xf32>
    %17 = vector.shape_cast %16 : vector<1x1x11x2xf32> to vector<1x11x2xf32>
    %18 = arith.addf %1, %11 : vector<1x32xf32>
    %19 = arith.addf %5, %17 : vector<1x11x2xf32>
    %c0_26 = arith.constant 0 : index
    %c2 = arith.constant 2 : index
    %c0_27 = arith.constant 0 : index
    %c0_28 = arith.constant 0 : index
    %20 = vector.load %arg4[%c0_26, %c2, %c0_27, %c0_28] : memref<1x4x11x2xf32, #tpu.memory_space<vmem>>, vector<1x1x11x2xf32>
    %21 = vector.shape_cast %20 : vector<1x1x11x2xf32> to vector<1x11x2xf32>
    %22 = arith.addf %3, %9 : vector<1x32xf32>
    %23 = arith.addf %7, %21 : vector<1x11x2xf32>
    %c0_29 = arith.constant 0 : index
    %c3 = arith.constant 3 : index
    %c0_30 = arith.constant 0 : index
    %c0_31 = arith.constant 0 : index
    %24 = vector.load %arg4[%c0_29, %c3, %c0_30, %c0_31] : memref<1x4x11x2xf32, #tpu.memory_space<vmem>>, vector<1x1x11x2xf32>
    %25 = vector.shape_cast %24 : vector<1x1x11x2xf32> to vector<1x11x2xf32>
    %26 = arith.addf %3, %11 : vector<1x32xf32>
    %27 = arith.addf %7, %25 : vector<1x11x2xf32>
    %c0_32 = arith.constant 0 : index
    %c0_33 = arith.constant 0 : index
    %c0_34 = arith.constant 0 : index
    %28 = vector.load %arg3[%c0_32, %c0_33, %c0_34] : memref<1x2x32xf32, #tpu.memory_space<vmem>>, vector<1x2x32xf32>
    %29 = vector.shape_cast %28 : vector<1x2x32xf32> to vector<2x32xf32>
    %cst = arith.constant 5.000000e-01 : f32
    %30 = vector.broadcast %cst : f32 to vector<2x32xf32>
    %31 = arith.mulf %29, %30 : vector<2x32xf32>
    %c0_35 = arith.constant 0 : index
    %c0_36 = arith.constant 0 : index
    %c0_37 = arith.constant 0 : index
    %c0_38 = arith.constant 0 : index
    %32 = vector.load %arg5[%c0_35, %c0_36, %c0_37, %c0_38] : memref<1x8x11x2xf32, #tpu.memory_space<vmem>>, vector<1x2x11x2xf32>
    %33 = vector.shape_cast %32 : vector<1x2x11x2xf32> to vector<2x11x2xf32>
    %cst_39 = arith.constant 5.000000e-01 : f32
    %34 = vector.broadcast %cst_39 : f32 to vector<2x11x2xf32>
    %35 = arith.mulf %33, %34 : vector<2x11x2xf32>
    %36 = vector.broadcast %14 : vector<1x32xf32> to vector<2x32xf32>
    %37 = arith.addf %36, %31 : vector<2x32xf32>
    %c0_40 = arith.constant 0 : index
    %c0_41 = arith.constant 0 : index
    %c0_42 = arith.constant 0 : index
    %38 = vector.load %arg6[%c0_40, %c0_41, %c0_42] : memref<1x8x32xf32, #tpu.memory_space<vmem>>, vector<1x2x32xf32>
    %39 = vector.shape_cast %38 : vector<1x2x32xf32> to vector<2x32xf32>
    %40 = vector.shape_cast %37 : vector<2x32xf32> to vector<1x2x32xf32>
    tpu.vector_store %arg6[%c0_40, %c0_41, %c0_42], %40 {strides = array<i32>} : memref<1x8x32xf32, #tpu.memory_space<vmem>>, vector<1x2x32xf32>,
    %41 = vector.broadcast %15 : vector<1x11x2xf32> to vector<2x11x2xf32>
    %42 = arith.addf %41, %35 : vector<2x11x2xf32>
    %c0_43 = arith.constant 0 : index
    %c0_44 = arith.constant 0 : index
    %c0_45 = arith.constant 0 : index
    %c0_46 = arith.constant 0 : index
    %43 = vector.load %arg7[%c0_43, %c0_44, %c0_45, %c0_46] : memref<1x8x11x2xf32, #tpu.memory_space<vmem>>, vector<1x2x11x2xf32>
    %44 = vector.shape_cast %43 : vector<1x2x11x2xf32> to vector<2x11x2xf32>
    %45 = vector.shape_cast %42 : vector<2x11x2xf32> to vector<1x2x11x2xf32>
    tpu.vector_store %arg7[%c0_43, %c0_44, %c0_45, %c0_46], %45 {strides = array<i32>} : memref<1x8x11x2xf32, #tpu.memory_space<vmem>>, vector<1x2x11x2xf32>,
    %c0_47 = arith.constant 0 : index
    %c2_48 = arith.constant 2 : index
    %c0_49 = arith.constant 0 : index
    %c0_50 = arith.constant 0 : index
    %46 = vector.load %arg5[%c0_47, %c2_48, %c0_49, %c0_50] : memref<1x8x11x2xf32, #tpu.memory_space<vmem>>, vector<1x2x11x2xf32>
    %47 = vector.shape_cast %46 : vector<1x2x11x2xf32> to vector<2x11x2xf32>
    %cst_51 = arith.constant 5.000000e-01 : f32
    %48 = vector.broadcast %cst_51 : f32 to vector<2x11x2xf32>
    %49 = arith.mulf %47, %48 : vector<2x11x2xf32>
    %50 = vector.broadcast %18 : vector<1x32xf32> to vector<2x32xf32>
    %51 = arith.addf %50, %31 : vector<2x32xf32>
    %c0_52 = arith.constant 0 : index
    %c2_53 = arith.constant 2 : index
    %c0_54 = arith.constant 0 : index
    %52 = vector.load %arg6[%c0_52, %c2_53, %c0_54] : memref<1x8x32xf32, #tpu.memory_space<vmem>>, vector<1x2x32xf32>
    %53 = vector.shape_cast %52 : vector<1x2x32xf32> to vector<2x32xf32>
    %54 = vector.shape_cast %51 : vector<2x32xf32> to vector<1x2x32xf32>
    tpu.vector_store %arg6[%c0_52, %c2_53, %c0_54], %54 {strides = array<i32>} : memref<1x8x32xf32, #tpu.memory_space<vmem>>, vector<1x2x32xf32>,
    %55 = vector.broadcast %19 : vector<1x11x2xf32> to vector<2x11x2xf32>
    %56 = arith.addf %55, %49 : vector<2x11x2xf32>
    %c0_55 = arith.constant 0 : index
    %c2_56 = arith.constant 2 : index
    %c0_57 = arith.constant 0 : index
    %c0_58 = arith.constant 0 : index
    %57 = vector.load %arg7[%c0_55, %c2_56, %c0_57, %c0_58] : memref<1x8x11x2xf32, #tpu.memory_space<vmem>>, vector<1x2x11x2xf32>
    %58 = vector.shape_cast %57 : vector<1x2x11x2xf32> to vector<2x11x2xf32>
    %59 = vector.shape_cast %56 : vector<2x11x2xf32> to vector<1x2x11x2xf32>
    tpu.vector_store %arg7[%c0_55, %c2_56, %c0_57, %c0_58], %59 {strides = array<i32>} : memref<1x8x11x2xf32, #tpu.memory_space<vmem>>, vector<1x2x11x2xf32>,
    %c0_59 = arith.constant 0 : index
    %c4 = arith.constant 4 : index
    %c0_60 = arith.constant 0 : index
    %c0_61 = arith.constant 0 : index
    %60 = vector.load %arg5[%c0_59, %c4, %c0_60, %c0_61] : memref<1x8x11x2xf32, #tpu.memory_space<vmem>>, vector<1x2x11x2xf32>
    %61 = vector.shape_cast %60 : vector<1x2x11x2xf32> to vector<2x11x2xf32>
    %cst_62 = arith.constant 5.000000e-01 : f32
    %62 = vector.broadcast %cst_62 : f32 to vector<2x11x2xf32>
    %63 = arith.mulf %61, %62 : vector<2x11x2xf32>
    %64 = vector.broadcast %22 : vector<1x32xf32> to vector<2x32xf32>
    %65 = arith.addf %64, %31 : vector<2x32xf32>
    %c0_63 = arith.constant 0 : index
    %c4_64 = arith.constant 4 : index
    %c0_65 = arith.constant 0 : index
    %66 = vector.load %arg6[%c0_63, %c4_64, %c0_65] : memref<1x8x32xf32, #tpu.memory_space<vmem>>, vector<1x2x32xf32>
    %67 = vector.shape_cast %66 : vector<1x2x32xf32> to vector<2x32xf32>
    %68 = vector.shape_cast %65 : vector<2x32xf32> to vector<1x2x32xf32>
    tpu.vector_store %arg6[%c0_63, %c4_64, %c0_65], %68 {strides = array<i32>} : memref<1x8x32xf32, #tpu.memory_space<vmem>>, vector<1x2x32xf32>,
    %69 = vector.broadcast %23 : vector<1x11x2xf32> to vector<2x11x2xf32>
    %70 = arith.addf %69, %63 : vector<2x11x2xf32>
    %c0_66 = arith.constant 0 : index
    %c4_67 = arith.constant 4 : index
    %c0_68 = arith.constant 0 : index
    %c0_69 = arith.constant 0 : index
    %71 = vector.load %arg7[%c0_66, %c4_67, %c0_68, %c0_69] : memref<1x8x11x2xf32, #tpu.memory_space<vmem>>, vector<1x2x11x2xf32>
    %72 = vector.shape_cast %71 : vector<1x2x11x2xf32> to vector<2x11x2xf32>
    %73 = vector.shape_cast %70 : vector<2x11x2xf32> to vector<1x2x11x2xf32>
    tpu.vector_store %arg7[%c0_66, %c4_67, %c0_68, %c0_69], %73 {strides = array<i32>} : memref<1x8x11x2xf32, #tpu.memory_space<vmem>>, vector<1x2x11x2xf32>,
    %c0_70 = arith.constant 0 : index
    %c6 = arith.constant 6 : index
    %c0_71 = arith.constant 0 : index
    %c0_72 = arith.constant 0 : index
    %74 = vector.load %arg5[%c0_70, %c6, %c0_71, %c0_72] : memref<1x8x11x2xf32, #tpu.memory_space<vmem>>, vector<1x2x11x2xf32>
    %75 = vector.shape_cast %74 : vector<1x2x11x2xf32> to vector<2x11x2xf32>
    %cst_73 = arith.constant 5.000000e-01 : f32
    %76 = vector.broadcast %cst_73 : f32 to vector<2x11x2xf32>
    %77 = arith.mulf %75, %76 : vector<2x11x2xf32>
    %78 = vector.broadcast %26 : vector<1x32xf32> to vector<2x32xf32>
    %79 = arith.addf %78, %31 : vector<2x32xf32>
    %c0_74 = arith.constant 0 : index
    %c6_75 = arith.constant 6 : index
    %c0_76 = arith.constant 0 : index
    %80 = vector.load %arg6[%c0_74, %c6_75, %c0_76] : memref<1x8x32xf32, #tpu.memory_space<vmem>>, vector<1x2x32xf32>
    %81 = vector.shape_cast %80 : vector<1x2x32xf32> to vector<2x32xf32>
    %82 = vector.shape_cast %79 : vector<2x32xf32> to vector<1x2x32xf32>
    tpu.vector_store %arg6[%c0_74, %c6_75, %c0_76], %82 {strides = array<i32>} : memref<1x8x32xf32, #tpu.memory_space<vmem>>, vector<1x2x32xf32>,
    %83 = vector.broadcast %27 : vector<1x11x2xf32> to vector<2x11x2xf32>
    %84 = arith.addf %83, %77 : vector<2x11x2xf32>
    %c0_77 = arith.constant 0 : index
    %c6_78 = arith.constant 6 : index
    %c0_79 = arith.constant 0 : index
    %c0_80 = arith.constant 0 : index
    %85 = vector.load %arg7[%c0_77, %c6_78, %c0_79, %c0_80] : memref<1x8x11x2xf32, #tpu.memory_space<vmem>>, vector<1x2x11x2xf32>
    %86 = vector.shape_cast %85 : vector<1x2x11x2xf32> to vector<2x11x2xf32>
    %87 = vector.shape_cast %84 : vector<2x11x2xf32> to vector<1x2x11x2xf32>
    tpu.vector_store %arg7[%c0_77, %c6_78, %c0_79, %c0_80], %87 {strides = array<i32>} : memref<1x8x11x2xf32, #tpu.memory_space<vmem>>, vector<1x2x11x2xf32>,
    return
  }
}

</mosaic_0001>

<llo_original>
// kernel: tpu_custom_call.1
$region0: #{tpu_custom_call.1}
  #allocation0 [shape = 'u32[]', space=smem, size = 0x4, offset = 0x4, fixed_abs, tag = 'smem constant byte address 0x4 - core index']
  #allocation1 [shape = 'u32[144,128]{1,0:T(1,128)}', space=vmem, size = 0x12000, scoped, tag = 'internal scratch']
  %s0 = inlined_call_operand.vmem [shape: f32[1,2,32], index: 0, kind: input, shape index: {}]
  %s1 = inlined_call_operand.vmem [shape: f32[1,2,11,2], index: 1, kind: input, shape index: {}]
  %s2 = inlined_call_operand.vmem [shape: f32[1,2,32], index: 2, kind: input, shape index: {}]
  %s3 = inlined_call_operand.vmem [shape: f32[1,2,32], index: 3, kind: input, shape index: {}]
  %s4 = inlined_call_operand.vmem [shape: f32[1,4,11,2], index: 4, kind: input, shape index: {}]
  %s5 = inlined_call_operand.vmem [shape: f32[1,8,11,2], index: 5, kind: input, shape index: {}]
  %s6 = inlined_call_operand.hbm [shape: f32[1,8,32], index: 6, kind: output, shape index: {0}]
  %s7 = inlined_call_operand.vmem [shape: f32[1,8,11,2], index: 7, kind: output, shape index: {1}]
  %8 = xla_tuple %s6, %s7
  %s9 = sld [smem:[#allocation0]]
  $region42: #{tpu_custom_call.1} parent=0
    _
  %s11 = ssub.s32 1, %s9
  %s12 = scalar_select 0, %s11, %s9
  $region1: #{tpu_custom_call.1} parent=0
    #allocation2 [shape = 'u8[4096]{0}', space=vmem, size = 0x1000, scoped, tag = 'output window, operand 0, single buffered']
    #allocation3 [shape = 's32[1]{0}', space=sflag, size = 0x4, scoped, tag = 'scoped memory for tpu_custom_call.1']
    %13 = vsyncpa [#allocation3], 0
    // Predicated region
    $region2: #{tpu_custom_call.1} parent=1 // pred_check
      _
    $region3: #{tpu_custom_call.1} parent=1 // pred_check_branch
      %15 = sbr.rel (0) target = $region5
    $region4: #{tpu_custom_call.1} parent=1 // pred_region
      _
    $region5: #{tpu_custom_call.1} parent=1 // pred_fallthru
      _
    // Predicated region
    $region6: #{tpu_custom_call.1} parent=1 // pred_check
      _
    $region7: #{tpu_custom_call.1} parent=1 // pred_check_branch
      %17 = sbr.rel (0) target = $region9
    $region8: #{tpu_custom_call.1} parent=1 // pred_region
      _
    $region9: #{tpu_custom_call.1} parent=1 // pred_fallthru
      _
    // Predicated region
    $region10: #{tpu_custom_call.1} parent=1 // pred_check
      _
    $region11: #{tpu_custom_call.1} parent=1 // pred_check_branch
      %19 = sbr.rel (0) target = $region13
    $region12: #{tpu_custom_call.1} parent=1 // pred_region
      _
    $region13: #{tpu_custom_call.1} parent=1 // pred_fallthru
      _
    // Predicated region
    $region14: #{tpu_custom_call.1} parent=1 // pred_check
      _
    $region15: #{tpu_custom_call.1} parent=1 // pred_check_branch
      %21 = sbr.rel (0) target = $region17
    $region16: #{tpu_custom_call.1} parent=1 // pred_region
      _
    $region17: #{tpu_custom_call.1} parent=1 // pred_fallthru
      _
    // Predicated region
    $region18: #{tpu_custom_call.1} parent=1 // pred_check
      _
    $region19: #{tpu_custom_call.1} parent=1 // pred_check_branch
      %23 = sbr.rel (0) target = $region21
    $region20: #{tpu_custom_call.1} parent=1 // pred_region
      _
    $region21: #{tpu_custom_call.1} parent=1 // pred_fallthru
      _
    // Predicated region
    $region22: #{tpu_custom_call.1} parent=1 // pred_check
      _
    $region23: #{tpu_custom_call.1} parent=1 // pred_check_branch
      %25 = sbr.rel (0) target = $region25
    $region24: #{tpu_custom_call.1} parent=1 // pred_region
      _
    $region25: #{tpu_custom_call.1} parent=1 // pred_fallthru
      _
    %v26 = vld [vmem:[%s0] sm:$0x1]
    %v27 = vld [vmem:[%s0 + $0x1] sm:$0x1]
    %v28 = vld [vmem:[%s1] sm:$0xff]
    %v29 = vld [vmem:[%s1 + $0x8] sm:$0x7]
    %s30 = scalar_lea.vmem %s1, 16
    %v31 = vld [vmem:[%s30] sm:$0xff]
    %v32 = vld [vmem:[%s30 + $0x8] sm:$0x7]
    %v33 = vld [vmem:[%s2] sm:$0x1]
    %v34 = vld [vmem:[%s2 + $0x1] sm:$0x1]
    %v35 = vld [vmem:[%s4] sm:$0xff]
    %v36 = vld [vmem:[%s4 + $0x8] sm:$0x7]
    %v37 = vadd.f32 %v26, %v33
    %v38 = vadd.f32 %v28, %v35
    %v39 = vadd.f32 %v29, %v36
    %s40 = scalar_lea.vmem %s4, 16
    %v41 = vld [vmem:[%s40] sm:$0xff]
    %v42 = vld [vmem:[%s40 + $0x8] sm:$0x7]
    %v43 = vadd.f32 %v26, %v34
    %v44 = vadd.f32 %v28, %v41
    %v45 = vadd.f32 %v29, %v42
    %s46 = scalar_lea.vmem %s4, 32
    %v47 = vld [vmem:[%s46] sm:$0xff]
    %v48 = vld [vmem:[%s46 + $0x8] sm:$0x7]
    %v49 = vadd.f32 %v27, %v33
    %v50 = vadd.f32 %v31, %v47
    %v51 = vadd.f32 %v32, %v48
    %s52 = scalar_lea.vmem %s4, 48
    %v53 = vld [vmem:[%s52] sm:$0xff]
    %v54 = vld [vmem:[%s52 + $0x8] sm:$0x7]
    %v55 = vadd.f32 %v27, %v34
    %v56 = vadd.f32 %v31, %v53
    %v57 = vadd.f32 %v32, %v54
    %v58 = vld [vmem:[%s3] sm:$0x3]
    %v59 = vmul.f32 %v58, 0.5
    %v60 = vld [vmem:[%s5] sm:$0xff]
    %v61 = vld [vmem:[%s5 + $0x8] sm:$0x7]
    %v62 = vld [vmem:[%s5 + $0x10] sm:$0xff]
    %v63 = vld [vmem:[%s5 + $0x18] sm:$0x7]
    %v64 = vmul.f32 %v60, 0.5
    %v65 = vmul.f32 %v61, 0.5
    %v66 = vmul.f32 %v62, 0.5
    %v67 = vmul.f32 %v63, 0.5
    %v68 = vlaneseq
    %v69 = vshrl.u32 %v68, 7
    %v70 = vsub.s32 0, %v69
    %v71 = vrot.slane %v37, %v70
    %v72 = vadd.f32 %v71, %v59
    %vm73 = vcmask 254976
    %74 = vst.msk [vmem:[#allocation2] sm:$0x3] %vm73, %v72
    %v75 = vadd.f32 %v38, %v64
    %v76 = vadd.f32 %v39, %v65
    %v77 = vadd.f32 %v38, %v66
    %v78 = vadd.f32 %v39, %v67
    %vm79 = vcmask 15360
    %80 = vst.msk [vmem:[%s7] sm:$0xff] %vm79, %v75
    %vm81 = vcmask 10240
    %82 = vst.msk [vmem:[%s7 + $0x8] sm:$0x7] %vm81, %v76
    %83 = vst.msk [vmem:[%s7 + $0x10] sm:$0xff] %vm79, %v77
    %84 = vst.msk [vmem:[%s7 + $0x18] sm:$0x7] %vm81, %v78
    %s85 = scalar_lea.vmem %s5, 32
    %v86 = vld [vmem:[%s85] sm:$0xff]
    %v87 = vld [vmem:[%s85 + $0x8] sm:$0x7]
    %v88 = vld [vmem:[%s85 + $0x10] sm:$0xff]
    %v89 = vld [vmem:[%s85 + $0x18] sm:$0x7]
    %v90 = vmul.f32 %v86, 0.5
    %v91 = vmul.f32 %v87, 0.5
    %v92 = vmul.f32 %v88, 0.5
    %v93 = vmul.f32 %v89, 0.5
    %v94 = vlaneseq
    %v95 = vshrl.u32 %v94, 7
    %v96 = vsub.s32 0, %v95
    %v97 = vrot.slane %v43, %v96
    %v98 = vadd.f32 %v97, %v59
    %99 = vst.msk [vmem:[#allocation2 + $0x2] sm:$0x3] %vm73, %v98
    %v100 = vadd.f32 %v44, %v90
    %v101 = vadd.f32 %v45, %v91
    %v102 = vadd.f32 %v44, %v92
    %v103 = vadd.f32 %v45, %v93
    %s104 = scalar_lea.vmem %s7, 32
    %105 = vst.msk [vmem:[%s104] sm:$0xff] %vm79, %v100
    %106 = vst.msk [vmem:[%s104 + $0x8] sm:$0x7] %vm81, %v101
    %107 = vst.msk [vmem:[%s104 + $0x10] sm:$0xff] %vm79, %v102
    %108 = vst.msk [vmem:[%s104 + $0x18] sm:$0x7] %vm81, %v103
    %s109 = scalar_lea.vmem %s5, 64
    %v110 = vld [vmem:[%s109] sm:$0xff]
    %v111 = vld [vmem:[%s109 + $0x8] sm:$0x7]
    %v112 = vld [vmem:[%s109 + $0x10] sm:$0xff]
    %v113 = vld [vmem:[%s109 + $0x18] sm:$0x7]
    %v114 = vmul.f32 %v110, 0.5
    %v115 = vmul.f32 %v111, 0.5
    %v116 = vmul.f32 %v112, 0.5
    %v117 = vmul.f32 %v113, 0.5
    %v118 = vlaneseq
    %v119 = vshrl.u32 %v118, 7
    %v120 = vsub.s32 0, %v119
    %v121 = vrot.slane %v49, %v120
    %v122 = vadd.f32 %v121, %v59
    %123 = vst.msk [vmem:[#allocation2 + $0x4] sm:$0x3] %vm73, %v122
    %v124 = vadd.f32 %v50, %v114
    %v125 = vadd.f32 %v51, %v115
    %v126 = vadd.f32 %v50, %v116
    %v127 = vadd.f32 %v51, %v117
    %s128 = scalar_lea.vmem %s7, 64
    %129 = vst.msk [vmem:[%s128] sm:$0xff] %vm79, %v124
    %130 = vst.msk [vmem:[%s128 + $0x8] sm:$0x7] %vm81, %v125
    %131 = vst.msk [vmem:[%s128 + $0x10] sm:$0xff] %vm79, %v126
    %132 = vst.msk [vmem:[%s128 + $0x18] sm:$0x7] %vm81, %v127
    %s133 = scalar_lea.vmem %s5, 96
    %v134 = vld [vmem:[%s133] sm:$0xff]
    %v135 = vld [vmem:[%s133 + $0x8] sm:$0x7]
    %v136 = vld [vmem:[%s133 + $0x10] sm:$0xff]
    %v137 = vld [vmem:[%s133 + $0x18] sm:$0x7]
    %v138 = vmul.f32 %v134, 0.5
    %v139 = vmul.f32 %v135, 0.5
    %v140 = vmul.f32 %v136, 0.5
    %v141 = vmul.f32 %v137, 0.5
    %v142 = vlaneseq
    %v143 = vshrl.u32 %v142, 7
    %v144 = vsub.s32 0, %v143
    %v145 = vrot.slane %v55, %v144
    %v146 = vadd.f32 %v145, %v59
    %147 = vst.msk [vmem:[#allocation2 + $0x6] sm:$0x3] %vm73, %v146
    %v148 = vadd.f32 %v56, %v138
    %v149 = vadd.f32 %v57, %v139
    %v150 = vadd.f32 %v56, %v140
    %v151 = vadd.f32 %v57, %v141
    %s152 = scalar_lea.vmem %s7, 96
    %153 = vst.msk [vmem:[%s152] sm:$0xff] %vm79, %v148
    %154 = vst.msk [vmem:[%s152 + $0x8] sm:$0x7] %vm81, %v149
    %155 = vst.msk [vmem:[%s152 + $0x10] sm:$0xff] %vm79, %v150
    %156 = vst.msk [vmem:[%s152 + $0x18] sm:$0x7] %vm81, %v151
    // Predicated region
    $region26: #{tpu_custom_call.1} parent=1 // pred_check
      _
    $region27: #{tpu_custom_call.1} parent=1 // pred_check_branch
      %158 = sbr.rel (0) target = $region29
    $region28: #{tpu_custom_call.1} parent=1 // pred_region
      %s160 = ssub.s32 128, 128
      %161 = vsyncadd [#allocation3], %s160
      %s163 = sshll.u32 [#allocation2], 4
      %s164 = int_to_ptr.vmem [resolvable:$true] %s163
      %166 = dma.vmem_to_hbm [thread:$0]  %s164, 128, %s6, [#allocation3]
    $region29: #{tpu_custom_call.1} parent=1 // pred_fallthru
      _
    // Predicated region
    $region30: #{tpu_custom_call.1} parent=1 // pred_check
      _
    $region31: #{tpu_custom_call.1} parent=1 // pred_check_branch
      %168 = sbr.rel (0) target = $region33
    $region32: #{tpu_custom_call.1} parent=1 // pred_region
      _
    $region33: #{tpu_custom_call.1} parent=1 // pred_fallthru
      _
    // Predicated region
    $region34: #{tpu_custom_call.1} parent=1 // pred_check
      _
    $region35: #{tpu_custom_call.1} parent=1 // pred_check_branch
      %170 = sbr.rel (0) target = $region37
    $region36: #{tpu_custom_call.1} parent=1 // pred_region
      %171 = dma.done [#allocation3], 128
    $region37: #{tpu_custom_call.1} parent=1 // pred_fallthru
      _
    // Predicated region
    $region38: #{tpu_custom_call.1} parent=1 // pred_check
      _
    $region39: #{tpu_custom_call.1} parent=1 // pred_check_branch
      %173 = sbr.rel (0) target = $region41
    $region40: #{tpu_custom_call.1} parent=1 // pred_region
      _
    $region41: #{tpu_custom_call.1} parent=1 // pred_fallthru
      _
    %174 = vsyncpa [#allocation3], 1

</llo_original>
